<compile_context>
chip_gen: v5e
topology: v5e:2x2
jax: 0.10.0
libtpu: 0.0.40
codegen_flags: <defaults>
</compile_context>

<pallas_src>
import functools

import jax
import jax.numpy as jnp
from jax import lax
from jax.experimental import pallas as pl
from jax.experimental.pallas import tpu as pltpu

EPS_BN = 1e-5
LANE = 128
SUBLANE = 8


def _pair(v):
    if isinstance(v, (tuple, list)):
        assert len(v) == 2
        return int(v[0]), int(v[1])
    return int(v), int(v)


def _round_up(v, m):
    return (v + m - 1) // m * m


def _vmem_budget_bytes():
    """Scoped-VMEM budget per pallas_call, derived from the chip generation.

    v7x: 64 MiB physical per TC -> ~48 MiB scoped.  v5e/v6e: 128 MiB -> ~96 MiB scoped.
    """
    cap = 128 * 1024 * 1024
    try:
        cap = int(pltpu.get_tpu_info().vmem_capacity_bytes)
    except Exception:  # interpreter / older jax: assume 128 MiB.
        pass
    return int(min(cap * 3 // 4, 96 * 1024 * 1024))


def _pick_lane_tile(hw, ckkp, c_outp, bpe_patch, budget):
    """Largest lane (spatial) tile, multiple of 128, fitting the VMEM budget.

    Accounts for double-buffered patch tiles, double-buffered f32 conv-out tiles, the weight
    block (2 buffers, conservatively), the affine pass' in/out tiles, plus fixed headroom.
    """
    hw128 = _round_up(hw, LANE)
    headroom = 2 * 1024 * 1024
    w_bytes = 2 * c_outp * ckkp * bpe_patch
    per_lane_conv = 2 * ckkp * bpe_patch + 2 * c_outp * 4   # patches + f32 conv_out (x2 bufs)
    per_lane_aff = 4 * c_outp * 4                           # affine pass in + out (x2 bufs)
    per_lane = max(per_lane_conv, per_lane_aff)
    avail = max(budget - headroom - w_bytes, per_lane * LANE)
    thw = (avail // per_lane) // LANE * LANE
    return int(max(LANE, min(thw, 2048, hw128)))


# ----------------------------------------------------------------------------------------
# Pallas kernels
# ----------------------------------------------------------------------------------------
def _conv_matmul_kernel(w_ref, p_ref, o_ref, s_ref):
    """One (batch, HW-tile) grid step.

    w_ref: (C_outp, CKKp)     conv weight flattened (c, dy, dx) -> CKK, zero-padded.
    p_ref: (1, CKKp, THW)     im2col patches for this tile (ReLU applied wrapper-side).
    o_ref: (1, C_outp, THW)   f32 conv output tile (lane-dense: spatial on lanes).
    s_ref: (1, 1, 2, C_outp)  per-tile partial [sum; sum_sq] per channel, lane-dense on C.
    """
    acc = jnp.dot(w_ref[...], p_ref[0], preferred_element_type=jnp.float32)   # MXU, f32 acc
    o_ref[0] = acc
    s1 = jnp.sum(acc, axis=1)          # cross-lane reduce -> XLU (free slot vs MXU)
    s2 = jnp.sum(acc * acc, axis=1)
    s_ref[0, 0] = jnp.stack([s1, s2], axis=0)   # (2, C_outp): lane-dense stats store


def _bn_affine_kernel(x_ref, scale_ref, shift_ref, o_ref):
    """BatchNorm folded to one per-channel affine: y = x * scale + shift."""
    o_ref[0] = x_ref[0] * scale_ref[...] + shift_ref[...]


# ----------------------------------------------------------------------------------------
# ReLU -> Conv2d(bias=False) -> BatchNorm(stats only)  (one stage, affine NOT yet applied)
# ----------------------------------------------------------------------------------------
def _relu_conv_bn_stats(x, w, gamma, beta, *, stride, padding,
                        pre_scale=None, pre_shift=None,
                        eps=EPS_BN, compute_dtype=jnp.bfloat16):
    """Returns (conv_out (B,C_outp,HWp) f32, scale (C_outp,1), shift (C_outp,1), meta).

    If pre_scale/pre_shift are given, the previous stage's BN affine is folded into this
    stage's wrapper-side ReLU + im2col (no extra HBM round trip).
    """
    B, C_in, H, W = x.shape
    C_out, C_in_w, kh, kw = w.shape
    assert C_in_w == C_in, (C_in_w, C_in)
    sh, sw = _pair(stride)
    ph, pw = _pair(padding)
    Ho = (H + 2 * ph - kh) // sh + 1
    Wo = (W + 2 * pw - kw) // sw + 1
    HW = Ho * Wo
    CKK = C_in * kh * kw

    bpe = jnp.dtype(compute_dtype).itemsize
    sub_pack = SUBLANE * (4 // bpe)                 # 8 for f32, 16 for bf16
    CKKp = _round_up(CKK, sub_pack)
    C_outp = _round_up(C_out, SUBLANE)

    budget = _vmem_budget_bytes()
    THW = _pick_lane_tile(HW, CKKp, C_outp, bpe, budget)
    HWp = _round_up(HW, THW)                        # pad UP to tile; never fall back to 128
    n_hw = HWp // THW

    # ---- wrapper-side (folded prev-BN affine) + ReLU, then im2col (aligned slices only).
    if pre_scale is not None:
        x = x * pre_scale.reshape(1, C_in, 1, 1) + pre_shift.reshape(1, C_in, 1, 1)
    xr = jnp.maximum(x, 0.0)                        # module's ReLU (fuses into im2col under jit)

    xpad = jnp.pad(xr, ((0, 0), (0, 0), (ph, ph), (pw, pw)))
    cols = []
    for dy in range(kh):
        for dx in range(kw):
            cols.append(xpad[:, :, dy:dy + sh * (Ho - 1) + 1:sh,
                                   dx:dx + sw * (Wo - 1) + 1:sw])
    # Row ordering = (c, dy, dx), matching w.reshape(C_out, CKK).
    patches = jnp.stack(cols, axis=2).reshape(B, CKK, HW)
    # Zero padding is numerically inert: zero columns/rows contribute nothing to conv or BN sums.
    patches = jnp.pad(patches, ((0, 0), (0, CKKp - CKK), (0, HWp - HW))).astype(compute_dtype)

    w2 = jnp.pad(w.reshape(C_out, CKK),
                 ((0, C_outp - C_out), (0, CKKp - CKK))).astype(compute_dtype)

    cparams = pltpu.CompilerParams(
        dimension_semantics=("parallel", "parallel"),   # megacore sharding over (B, n_hw)
        vmem_limit_bytes=budget)

    conv_out, part = pl.pallas_call(
        _conv_matmul_kernel,
        out_shape=(jax.ShapeDtypeStruct((B, C_outp, HWp), jnp.float32),
                   jax.ShapeDtypeStruct((B, n_hw, 2, C_outp), jnp.float32)),
        grid_spec=pltpu.PrefetchScalarGridSpec(
            num_scalar_prefetch=0,
            grid=(B, n_hw),
            in_specs=[pl.BlockSpec((C_outp, CKKp), lambda b, t: (0, 0)),
                      pl.BlockSpec((1, CKKp, THW), lambda b, t: (b, 0, t))],
            out_specs=[pl.BlockSpec((1, C_outp, THW), lambda b, t: (b, 0, t)),
                       pl.BlockSpec((1, 1, 2, C_outp), lambda b, t: (b, t, 0, 0))]),
        compiler_params=cparams,
    )(w2, patches)

    # ---- finalize BatchNorm batch statistics (tiny per-channel math; exact under tiling) ----
    gamma_p = jnp.pad(gamma.astype(jnp.float32), (0, C_outp - C_out), constant_values=1.0)
    beta_p = jnp.pad(beta.astype(jnp.float32), (0, C_outp - C_out))

    tot = jnp.sum(part, axis=(0, 1))                 # (2, C_outp)
    count = B * HW                                   # true element count (padding excluded)
    mean = tot[0] / count
    var = jnp.maximum(tot[1] / count - mean * mean, 0.0)   # clamp vs cancellation
    inv = lax.rsqrt(var + eps)
    scale = (gamma_p * inv).astype(jnp.float32).reshape(C_outp, 1)
    shift = (beta_p - mean * gamma_p * inv).astype(jnp.float32).reshape(C_outp, 1)

    meta = dict(C_out=C_out, C_outp=C_outp, Ho=Ho, Wo=Wo, HW=HW, HWp=HWp,
                THW=THW, n_hw=n_hw, cparams=cparams)
    return conv_out, scale, shift, meta


def _apply_bn_affine(conv_out, scale, shift, meta):
    """y = conv_out * scale + shift, in place (conv buffer reused via input_output_aliases)."""
    B = conv_out.shape[0]
    C_outp, THW, n_hw = meta["C_outp"], meta["THW"], meta["n_hw"]
    return pl.pallas_call(
        _bn_affine_kernel,
        out_shape=jax.ShapeDtypeStruct(conv_out.shape, jnp.float32),
        grid_spec=pltpu.PrefetchScalarGridSpec(
            num_scalar_prefetch=0,
            grid=(B, n_hw),
            in_specs=[pl.BlockSpec((1, C_outp, THW), lambda b, t: (b, 0, t)),
                      pl.BlockSpec((C_outp, 1), lambda b, t: (0, 0)),
                      pl.BlockSpec((C_outp, 1), lambda b, t: (0, 0))],
            out_specs=pl.BlockSpec((1, C_outp, THW), lambda b, t: (b, 0, t))),
        compiler_params=meta["cparams"],
        input_output_aliases={0: 0},
    )(conv_out, scale, shift)


def relu_conv_bn(x, w, gamma, beta, *, stride, padding, pre_scale=None, pre_shift=None,
                 eps=EPS_BN, compute_dtype=jnp.bfloat16):
    """Full stage: ReLU -> Conv2d(bias=False) -> BatchNorm2d (training-mode).  Returns NCHW f32."""
    conv_out, scale, shift, m = _relu_conv_bn_stats(
        x, w, gamma, beta, stride=stride, padding=padding,
        pre_scale=pre_scale, pre_shift=pre_shift, eps=eps, compute_dtype=compute_dtype)
    y = _apply_bn_affine(conv_out, scale, shift, m)
    B = x.shape[0]
    return y[:, :m["C_out"], :m["HW"]].reshape(B, m["C_out"], m["Ho"], m["Wo"])


# ----------------------------------------------------------------------------------------
# Full `Conv` module forward (both constructor branches)
# ----------------------------------------------------------------------------------------
def conv_module_forward(x, params, kernel_size, stride, padding,
                        compute_dtype=jnp.bfloat16):
    if isinstance(kernel_size, int):
        w, gamma, beta = params
        return relu_conv_bn(x, w, gamma, beta, stride=stride, padding=padding,
                            compute_dtype=compute_dtype)
    (w1, g1, b1), (w2, g2, b2) = params
    # Stage 1: conv + BN statistics only; its affine is NOT materialized -- it is folded
    # (together with stage 2's ReLU) into stage 2's wrapper-side im2col, saving a full
    # HBM round trip of the largest intermediate.
    conv1, sc1, sh1, m1 = _relu_conv_bn_stats(x, w1, g1, b1, stride=(1, stride),
                                              padding=padding[0],
                                              compute_dtype=compute_dtype)
    B = x.shape[0]
    x2 = conv1[:, :m1["C_out"], :m1["HW"]].reshape(B, m1["C_out"], m1["Ho"], m1["Wo"])
    return relu_conv_bn(x2, w2, g2, b2, stride=(stride, 1), padding=padding[1],
                        pre_scale=sc1[:m1["C_out"]], pre_shift=sh1[:m1["C_out"]],
                        compute_dtype=compute_dtype)


# ----------------------------------------------------------------------------------------
# Pure-JAX reference (f32) for verification
# ----------------------------------------------------------------------------------------
def _ref_relu_conv_bn(x, w, gamma, beta, stride, padding, eps=EPS_BN):
    sh, sw = _pair(stride)
    ph, pw = _pair(padding)
    xr = jnp.maximum(x, 0.0)
    conv = lax.conv_general_dilated(xr, w, (sh, sw), ((ph, ph), (pw, pw)),
                                    dimension_numbers=("NCHW", "OIHW", "NCHW"))
    m = jnp.mean(conv, axis=(0, 2, 3), keepdims=True)
    v = jnp.mean((conv - m) ** 2, axis=(0, 2, 3), keepdims=True)
    return ((conv - m) * lax.rsqrt(v + eps) * gamma[None, :, None, None]
            + beta[None, :, None, None])


if __name__ == "__main__":
    key = jax.random.PRNGKey(0)
    B, C_in, H, W = 2, 4, 16, 16
    C_out = 8
    k0, k1, k2, k3, k4, k5, k6, k7 = jax.random.split(key, 8)

    x = jax.random.normal(k0, (B, C_in, H, W), jnp.float32)
    w = jax.random.normal(k1, (C_out, C_in, 3, 3), jnp.float32) * 0.1
    gamma = 1.0 + 0.1 * jax.random.normal(k2, (C_out,), jnp.float32)
    beta = 0.1 * jax.random.normal(k3, (C_out,), jnp.float32)

    def check(got, want, tol, name):
        assert got.shape == want.shape, (name, got.shape, want.shape)
        err = float(jnp.max(jnp.abs(got - want)))
        assert err < tol, (name, err)

    # 1) int kernel_size branch: k=3, stride=1, padding=1, f32 MXU operands.
    run1 = jax.jit(functools.partial(relu_conv_bn, stride=1, padding=1,
                                     compute_dtype=jnp.float32))
    y = jax.block_until_ready(run1(x, w, gamma, beta))
    y_ref = _ref_relu_conv_bn(x, w, gamma, beta, 1, 1)
    check(y, y_ref, 2e-2, "k3_s1_f32")

    # 2) Same module, bf16 MXU operands (v6e/v7x fast path), f32 accumulation.
    run2 = jax.jit(functools.partial(relu_conv_bn, stride=1, padding=1,
                                     compute_dtype=jnp.bfloat16))
    y_bf = jax.block_until_ready(run2(x, w, gamma, beta))
    check(y_bf, y_ref, 5e-2, "k3_s1_bf16")

    # 3) stride=2 (exercises strided im2col + lane padding of HW).
    run3 = jax.jit(functools.partial(relu_conv_bn, stride=2, padding=1,
                                     compute_dtype=jnp.float32))
    y2 = jax.block_until_ready(run3(x, w, gamma, beta))
    check(y2, _ref_relu_conv_bn(x, w, gamma, beta, 2, 1), 2e-2, "k3_s2_f32")

    # 4) tuple kernel_size branch: (1,7)/(7,1) factorized pair (input must have C_out chans).
    x2 = jax.random.normal(k4, (B, C_out, H, W), jnp.float32)
    w_a = jax.random.normal(k5, (C_out, C_out, 1, 7), jnp.float32) * 0.1
    w_b = jax.random.normal(k6, (C_out, C_out, 7, 1), jnp.float32) * 0.1
    g_a = jnp.ones((C_out,), jnp.float32)
    b_a = jnp.zeros((C_out,), jnp.float32)
    g_b = 1.0 + 0.1 * jax.random.normal(k7, (C_out,), jnp.float32)
    b_b = jnp.zeros((C_out,), jnp.float32)
    run4 = jax.jit(functools.partial(conv_module_forward, kernel_size=(1, 7), stride=1,
                                     padding=((0, 3), (3, 0)), compute_dtype=jnp.float32))
    y3 = jax.block_until_ready(run4(x2, ((w_a, g_a, b_a), (w_b, g_b, b_b))))
    r = _ref_relu_conv_bn(x2, w_a, g_a, b_a, (1, 1), (0, 3))
    r = _ref_relu_conv_bn(r, w_b, g_b, b_b, (1, 1), (3, 0))
    check(y3, r, 5e-2, "k1x7_7x1_pair")

    print("KERNEL_OK")
</pallas_src>

<mosaic_0001>
module attributes {stable_mosaic.version = 11 : i64} {
  func.func @_conv_matmul_kernel(%arg0: i32, %arg1: i32, %arg2: memref<8x40xf32, #tpu.memory_space<vmem>>, %arg3: memref<1x40x256xf32, #tpu.memory_space<vmem>>, %arg4: memref<1x8x256xf32, #tpu.memory_space<vmem>>, %arg5: memref<1x1x2x8xf32, #tpu.memory_space<vmem>>) attributes {dimension_semantics = [#tpu.dimension_semantics<parallel>, #tpu.dimension_semantics<parallel>], iteration_bounds = array<i64: 2, 1>, scalar_prefetch = 0 : i64, scratch_operands = 0 : i64, tpu.core_type = #tpu.core_type<tc>, window_params = [{pipeline_mode = #tpu.pipeline_mode<synchronous>, transform_indices = @transform_0, window_bounds = array<i64: 8, 40>}, {transform_indices = @transform_1, window_bounds = array<i64: 1, 40, 256>}, {transform_indices = @transform_2, window_bounds = array<i64: 1, 8, 256>}, {transform_indices = @transform_3, window_bounds = array<i64: 1, 1, 2, 8>}]} {
    %c0 = arith.constant 0 : index
    %c0_0 = arith.constant 0 : index
    %0 = vector.load %arg2[%c0, %c0_0] : memref<8x40xf32, #tpu.memory_space<vmem>>, vector<8x40xf32>
    %c0_1 = arith.constant 0 : index
    %c0_2 = arith.constant 0 : index
    %c0_3 = arith.constant 0 : index
    %1 = vector.load %arg3[%c0_1, %c0_2, %c0_3] : memref<1x40x256xf32, #tpu.memory_space<vmem>>, vector<1x40x256xf32>
    %2 = vector.shape_cast %1 : vector<1x40x256xf32> to vector<40x256xf32>
    %cst = arith.constant dense<0.000000e+00> : vector<8x256xf32>
    %3 = tpu.matmul %0, %2, %cst {dimension_numbers = #tpu.dot_dimension_numbers<[1], [0], [0], [1], [0, 0, 1, 1], [], []>} : vector<8x40xf32>, vector<40x256xf32>, vector<8x256xf32> -> vector<8x256xf32>
    %c0_4 = arith.constant 0 : index
    %c0_5 = arith.constant 0 : index
    %c0_6 = arith.constant 0 : index
    %4 = vector.load %arg4[%c0_4, %c0_5, %c0_6] : memref<1x8x256xf32, #tpu.memory_space<vmem>>, vector<1x8x256xf32>
    %5 = vector.shape_cast %4 : vector<1x8x256xf32> to vector<8x256xf32>
    %6 = vector.shape_cast %3 : vector<8x256xf32> to vector<1x8x256xf32>
    tpu.vector_store %arg4[%c0_4, %c0_5, %c0_6], %6 {strides = array<i32>} : memref<1x8x256xf32, #tpu.memory_space<vmem>>, vector<1x8x256xf32>,
    %cst_7 = arith.constant dense<0.000000e+00> : vector<8xf32>
    %7 = vector.multi_reduction <add>, %3, %cst_7 [1] : vector<8x256xf32> to vector<8xf32>
    %8 = arith.mulf %3, %3 : vector<8x256xf32>
    %cst_8 = arith.constant dense<0.000000e+00> : vector<8xf32>
    %9 = vector.multi_reduction <add>, %8, %cst_8 [1] : vector<8x256xf32> to vector<8xf32>
    %10 = vector.shape_cast %7 : vector<8xf32> to vector<1x8xf32>
    %11 = vector.shape_cast %9 : vector<8xf32> to vector<1x8xf32>
    %12 = tpu.concatenate %10, %11 in 0 : vector<1x8xf32>, vector<1x8xf32> -> vector<2x8xf32>
    %c0_9 = arith.constant 0 : index
    %c0_10 = arith.constant 0 : index
    %c0_11 = arith.constant 0 : index
    %c0_12 = arith.constant 0 : index
    %13 = vector.load %arg5[%c0_9, %c0_10, %c0_11, %c0_12] : memref<1x1x2x8xf32, #tpu.memory_space<vmem>>, vector<1x1x2x8xf32>
    %14 = vector.shape_cast %13 : vector<1x1x2x8xf32> to vector<2x8xf32>
    %15 = vector.shape_cast %12 : vector<2x8xf32> to vector<1x1x2x8xf32>
    tpu.vector_store %arg5[%c0_9, %c0_10, %c0_11, %c0_12], %15 {strides = array<i32>} : memref<1x1x2x8xf32, #tpu.memory_space<vmem>>, vector<1x1x2x8xf32>,
    return
  }
  func.func @transform_0(%arg0: i32, %arg1: i32) -> (i32, i32) {
    %c0_i32 = arith.constant 0 : i32
    %c0_i32_0 = arith.constant 0 : i32
    %c0_i32_1 = arith.constant 0 : i32
    return %c0_i32, %c0_i32_0 : i32, i32
  }
  func.func @transform_1(%arg0: i32, %arg1: i32) -> (i32, i32, i32) {
    %c0_i32 = arith.constant 0 : i32
    %c0_i32_0 = arith.constant 0 : i32
    return %arg0, %c0_i32, %arg1 : i32, i32, i32
  }
  func.func @transform_2(%arg0: i32, %arg1: i32) -> (i32, i32, i32) {
    %c0_i32 = arith.constant 0 : i32
    %c0_i32_0 = arith.constant 0 : i32
    return %arg0, %c0_i32, %arg1 : i32, i32, i32
  }
  func.func @transform_3(%arg0: i32, %arg1: i32) -> (i32, i32, i32, i32) {
    %c0_i32 = arith.constant 0 : i32
    %c0_i32_0 = arith.constant 0 : i32
    %c0_i32_1 = arith.constant 0 : i32
    return %arg0, %arg1, %c0_i32, %c0_i32_0 : i32, i32, i32, i32
  }
}

module attributes {stable_mosaic.version = 11 : i64} {
  func.func @_bn_affine_kernel(%arg0: i32, %arg1: i32, %arg2: memref<1x8x256xf32, #tpu.memory_space<vmem>>, %arg3: memref<8x1xf32, #tpu.memory_space<vmem>>, %arg4: memref<8x1xf32, #tpu.memory_space<vmem>>, %arg5: memref<1x8x256xf32, #tpu.memory_space<vmem>>) attributes {dimension_semantics = [#tpu.dimension_semantics<parallel>, #tpu.dimension_semantics<parallel>], iteration_bounds = array<i64: 2, 1>, scalar_prefetch = 0 : i64, scratch_operands = 0 : i64, tpu.core_type = #tpu.core_type<tc>, window_params = [{transform_indices = @transform_0, window_bounds = array<i64: 1, 8, 256>}, {pipeline_mode = #tpu.pipeline_mode<synchronous>, transform_indices = @transform_1, window_bounds = array<i64: 8, 1>}, {pipeline_mode = #tpu.pipeline_mode<synchronous>, transform_indices = @transform_2, window_bounds = array<i64: 8, 1>}, {transform_indices = @transform_3, window_bounds = array<i64: 1, 8, 256>}]} {
    %c0 = arith.constant 0 : index
    %c0_0 = arith.constant 0 : index
    %c0_1 = arith.constant 0 : index
    %0 = vector.load %arg2[%c0, %c0_0, %c0_1] : memref<1x8x256xf32, #tpu.memory_space<vmem>>, vector<1x8x256xf32>
    %1 = vector.shape_cast %0 : vector<1x8x256xf32> to vector<8x256xf32>
    %c0_2 = arith.constant 0 : index
    %c0_3 = arith.constant 0 : index
    %2 = vector.load %arg3[%c0_2, %c0_3] : memref<8x1xf32, #tpu.memory_space<vmem>>, vector<8x1xf32>
    %3 = vector.broadcast %2 : vector<8x1xf32> to vector<8x256xf32>
    %4 = arith.mulf %1, %3 : vector<8x256xf32>
    %c0_4 = arith.constant 0 : index
    %c0_5 = arith.constant 0 : index
    %5 = vector.load %arg4[%c0_4, %c0_5] : memref<8x1xf32, #tpu.memory_space<vmem>>, vector<8x1xf32>
    %6 = vector.broadcast %5 : vector<8x1xf32> to vector<8x256xf32>
    %7 = arith.addf %4, %6 : vector<8x256xf32>
    %c0_6 = arith.constant 0 : index
    %c0_7 = arith.constant 0 : index
    %c0_8 = arith.constant 0 : index
    %8 = vector.load %arg5[%c0_6, %c0_7, %c0_8] : memref<1x8x256xf32, #tpu.memory_space<vmem>>, vector<1x8x256xf32>
    %9 = vector.shape_cast %8 : vector<1x8x256xf32> to vector<8x256xf32>
    %10 = vector.shape_cast %7 : vector<8x256xf32> to vector<1x8x256xf32>
    tpu.vector_store %arg5[%c0_6, %c0_7, %c0_8], %10 {strides = array<i32>} : memref<1x8x256xf32, #tpu.memory_space<vmem>>, vector<1x8x256xf32>,
    return
  }
  func.func @transform_0(%arg0: i32, %arg1: i32) -> (i32, i32, i32) {
    %c0_i32 = arith.constant 0 : i32
    %c0_i32_0 = arith.constant 0 : i32
    return %arg0, %c0_i32, %arg1 : i32, i32, i32
  }
  func.func @transform_1(%arg0: i32, %arg1: i32) -> (i32, i32) {
    %c0_i32 = arith.constant 0 : i32
    %c0_i32_0 = arith.constant 0 : i32
    %c0_i32_1 = arith.constant 0 : i32
    return %c0_i32, %c0_i32_0 : i32, i32
  }
  func.func @transform_2(%arg0: i32, %arg1: i32) -> (i32, i32) {
    %c0_i32 = arith.constant 0 : i32
    %c0_i32_0 = arith.constant 0 : i32
    %c0_i32_1 = arith.constant 0 : i32
    return %c0_i32, %c0_i32_0 : i32, i32
  }
  func.func @transform_3(%arg0: i32, %arg1: i32) -> (i32, i32, i32) {
    %c0_i32 = arith.constant 0 : i32
    %c0_i32_0 = arith.constant 0 : i32
    return %arg0, %c0_i32, %arg1 : i32, i32, i32
  }
}

</mosaic_0001>

<llo_original>
// kernel: relu_conv_bn.2
$region0: #{relu_conv_bn.2}
  #allocation0 [shape = 'u32[]', space=smem, size = 0x4, offset = 0x4, fixed_abs, tag = 'smem constant byte address 0x4 - core index']
  #allocation1 [shape = 'u32[72,128]{1,0:T(1,128)}', space=vmem, size = 0x9000, scoped, tag = 'internal scratch']
  %s0 = inlined_call_operand.vmem [shape: f32[8,40], index: 0, kind: input, shape index: {}]
  %s1 = inlined_call_operand.vmem [shape: f32[2,40,256], index: 1, kind: input, shape index: {}]
  %s2 = inlined_call_operand.vmem [shape: f32[2,8,256], index: 2, kind: output, shape index: {0}]
  %s3 = inlined_call_operand.vmem [shape: f32[2,1,2,8], index: 3, kind: output, shape index: {1}]
  %4 = xla_tuple %s2, %s3
  %s5 = sld [smem:[#allocation0]]
  $region49: #{relu_conv_bn.2} parent=0
    _
  %s7 = ssub.s32 1, %s5
  %s8 = scalar_select 0, %s7, %s5
  loop: start=0, step=1, limit=4
  $region2: #{relu_conv_bn.2} parent=0 // loop_pre_header
    _
  $region3: #{relu_conv_bn.2} parent=0 // loop_header
    %s10 = sphi 0, %s14
    %p11 = scmp.ge.s32.totalorder %s10, 4
    %s17 = sphi 0, %s29
    %s18 = sphi 0, %s25
    %s19 = sphi 0, %s17
    %s20 = sphi 0, %s18
    %s21 = sphi 0, %s19
    %s22 = sphi 0, %s20
    %s30 = sphi 0, %s30
    %s32 = sphi 0, %s30
    %s33 = sphi 0, %s32
    %s47 = sphi 0, %s33
    %s55 = sphi 0, %s57
    %s58 = sphi 0, %s55
    %s59 = sphi 0, %s58
    %s75 = sphi 0, %s59
    %s83 = sphi 0, %s85
    %s86 = sphi 0, %s83
    %s87 = sphi 0, %s86
    %s103 = sphi 0, %s87
    %s111 = sphi 0, %s113
    %s114 = sphi 0, %s111
    %s115 = sphi 0, %s114
    %s131 = sphi 0, %s115
  $region4: #{relu_conv_bn.2} parent=0 // loop_header_branch
    %13 = sbr.rel (%p11) target = $region8
  $region5: #{relu_conv_bn.2} parent=0 // loop_body
    %s15 = ssub.s32 %s10, 1
    %s16 = ssub.s32 %s10, 2
    %s23 = sadd.s32 1, %s18
    %p24 = scmp.ge.s32.totalorder %s23, 1
    %s25 = scalar_select %p24, 0, %s23
    %s26 = sadd.s32 1, %s17
    %s27 = scalar_select %p24, %s26, %s17
    %p28 = scmp.ge.s32.totalorder %s27, 2
    %s29 = scalar_select %p28, 0, %s27
    %s31 = sadd.s32 %s30, 1
    %p34 = scmp.eq.s32.totalorder %s10, 1
    %p35 = scmp.ne.s32.totalorder %s30, %s32
    %p36 = scmp.eq.s32.totalorder %s10, 0
    %p37 = por %p35, %p36
    %p38 = scmp.ne.s32.totalorder %s30, %s32
    %p39 = scmp.eq.s32.totalorder %s15, 1
    %p40 = por %p38, %p39
    %p41 = scmp.ne.s32.totalorder %s32, %s33
    %p42 = scmp.eq.s32.totalorder %s15, 0
    %p43 = por %p41, %p42
    %p44 = scmp.ne.s32.totalorder %s32, %s33
    %p45 = scmp.eq.s32.totalorder %s16, 1
    %p46 = por %p44, %p45
    %p48 = scmp.ne.s32.totalorder %s33, %s47
    %p49 = scmp.eq.s32.totalorder %s16, 0
    %p50 = por %p48, %p49
    %s51 = ssub.s32 %s17, %s29
    %s52 = ssub.s32 %s18, %s25
    %s53 = sor.u32 %s51, %s52
    %p54 = scmp.eq.s32.totalorder %s53, 0
    %s56 = sadd.s32 %s55, 1
    %s57 = scalar_select %p54, %s55, %s56
    %p60 = pneg %p54
    %p61 = scmp.eq.s32.totalorder %s10, 1
    %p62 = por %p60, %p61
    %p63 = scmp.ne.s32.totalorder %s55, %s58
    %p64 = scmp.eq.s32.totalorder %s10, 0
    %p65 = por %p63, %p64
    %p66 = scmp.ne.s32.totalorder %s55, %s58
    %p67 = scmp.eq.s32.totalorder %s15, 1
    %p68 = por %p66, %p67
    %p69 = scmp.ne.s32.totalorder %s58, %s59
    %p70 = scmp.eq.s32.totalorder %s15, 0
    %p71 = por %p69, %p70
    %p72 = scmp.ne.s32.totalorder %s58, %s59
    %p73 = scmp.eq.s32.totalorder %s16, 1
    %p74 = por %p72, %p73
    %p76 = scmp.ne.s32.totalorder %s59, %s75
    %p77 = scmp.eq.s32.totalorder %s16, 0
    %p78 = por %p76, %p77
    %s79 = ssub.s32 %s17, %s29
    %s80 = ssub.s32 %s18, %s25
    %s81 = sor.u32 %s79, %s80
    %p82 = scmp.eq.s32.totalorder %s81, 0
    %s84 = sadd.s32 %s83, 1
    %s85 = scalar_select %p82, %s83, %s84
    %p88 = pneg %p82
    %p89 = scmp.eq.s32.totalorder %s10, 1
    %p90 = por %p88, %p89
    %p91 = scmp.ne.s32.totalorder %s83, %s86
    %p92 = scmp.eq.s32.totalorder %s10, 0
    %p93 = por %p91, %p92
    %p94 = scmp.ne.s32.totalorder %s83, %s86
    %p95 = scmp.eq.s32.totalorder %s15, 1
    %p96 = por %p94, %p95
    %p97 = scmp.ne.s32.totalorder %s86, %s87
    %p98 = scmp.eq.s32.totalorder %s15, 0
    %p99 = por %p97, %p98
    %p100 = scmp.ne.s32.totalorder %s86, %s87
    %p101 = scmp.eq.s32.totalorder %s16, 1
    %p102 = por %p100, %p101
    %p104 = scmp.ne.s32.totalorder %s87, %s103
    %p105 = scmp.eq.s32.totalorder %s16, 0
    %p106 = por %p104, %p105
    %s107 = ssub.s32 %s17, %s29
    %s108 = ssub.s32 %s18, %s25
    %s109 = sor.u32 %s107, %s108
    %p110 = scmp.eq.s32.totalorder %s109, 0
    %s112 = sadd.s32 %s111, 1
    %s113 = scalar_select %p110, %s111, %s112
    %p116 = pneg %p110
    %p117 = scmp.eq.s32.totalorder %s10, 1
    %p118 = por %p116, %p117
    %p119 = scmp.ne.s32.totalorder %s111, %s114
    %p120 = scmp.eq.s32.totalorder %s10, 0
    %p121 = por %p119, %p120
    %p122 = scmp.ne.s32.totalorder %s111, %s114
    %p123 = scmp.eq.s32.totalorder %s15, 1
    %p124 = por %p122, %p123
    %p125 = scmp.ne.s32.totalorder %s114, %s115
    %p126 = scmp.eq.s32.totalorder %s15, 0
    %p127 = por %p125, %p126
    %p128 = scmp.ne.s32.totalorder %s114, %s115
    %p129 = scmp.eq.s32.totalorder %s16, 1
    %p130 = por %p128, %p129
    %p132 = scmp.ne.s32.totalorder %s115, %s131
    %p133 = scmp.eq.s32.totalorder %s16, 0
    %p134 = por %p132, %p133
    %p135 = scmp.le.s32.totalorder 1, %s10
    %p136 = scmp.lt.s32.totalorder %s10, 3
    %p137 = pnand %p135, %p136
    %p138 = pneg %p137
    // Predicated region
    $region9: #{relu_conv_bn.2} parent=5 // pred_check
      _
    $region10: #{relu_conv_bn.2} parent=5 // pred_check_branch
      %140 = sbr.rel (%p137) target = $region12
    $region11: #{relu_conv_bn.2} parent=5 // pred_region
      %s141 = ssub.s32 %s10, 1
      // Predicated region
      $region13: #{relu_conv_bn.2} parent=11 // pred_check
        %p142 = pneg %p43
      $region14: #{relu_conv_bn.2} parent=11 // pred_check_branch
        %144 = sbr.rel (%p142) target = $region16
      $region15: #{relu_conv_bn.2} parent=11 // pred_region
        _
      $region16: #{relu_conv_bn.2} parent=11 // pred_fallthru
        _
    $region12: #{relu_conv_bn.2} parent=5 // pred_fallthru
      _
    %p145 = scmp.lt.s32.totalorder %s10, 2
    // Predicated region
    $region17: #{relu_conv_bn.2} parent=5 // pred_check
      %p146 = pneg %p145
    $region18: #{relu_conv_bn.2} parent=5 // pred_check_branch
      %148 = sbr.rel (%p146) target = $region20
    $region19: #{relu_conv_bn.2} parent=5 // pred_region
      // Predicated region
      $region21: #{relu_conv_bn.2} parent=19 // pred_check
        %p149 = pneg %p65
      $region22: #{relu_conv_bn.2} parent=19 // pred_check_branch
        %151 = sbr.rel (%p149) target = $region24
      $region23: #{relu_conv_bn.2} parent=19 // pred_region
        %s152 = smul.u32 2, %s18
        %p153 = scmp.lt.s32.totalorder %s17, 1
        %s154 = scalar_select %p153, %s17, 1
        %p155 = scmp.lt.s32.totalorder %s152, 1
        %s156 = scalar_select %p155, %s152, 1
        %s157 = smul.addr %s154, 10
        %s158 = sadd.s32 %s156, %s157
        %s159 = smul.addr %s158, 8
        %s160 = scalar_lea.vmem %s1, %s159
        %s161 = smul.u32 2, %s18
      $region24: #{relu_conv_bn.2} parent=19 // pred_fallthru
        _
    $region20: #{relu_conv_bn.2} parent=5 // pred_fallthru
      _
    %p162 = scmp.le.s32.totalorder 1, %s10
    %p163 = scmp.lt.s32.totalorder %s10, 3
    %p164 = pnand %p162, %p163
    %p165 = pneg %p164
    // Predicated region
    $region25: #{relu_conv_bn.2} parent=5 // pred_check
      _
    $region26: #{relu_conv_bn.2} parent=5 // pred_check_branch
      %167 = sbr.rel (%p164) target = $region28
    $region27: #{relu_conv_bn.2} parent=5 // pred_region
      %s168 = ssub.s32 %s10, 1
      %p169 = pneg %p43
      %p170 = pneg %p40
      %s171 = smul.u32 2, %s20
      %p172 = scmp.lt.s32.totalorder %s19, 1
      %s173 = scalar_select %p172, %s19, 1
      %p174 = scmp.lt.s32.totalorder %s171, 1
      %s175 = scalar_select %p174, %s171, 1
      %s176 = smul.addr %s173, 10
      %s177 = sadd.s32 %s175, %s176
      %s178 = smul.addr %s177, 8
      %s179 = scalar_lea.vmem %s1, %s178
      %p180 = pneg %p71
      %p181 = pneg %p68
      %p182 = pneg %p99
      %p183 = pneg %p96
      %s184 = smul.u32 2, %s20
      %p185 = scmp.lt.s32.totalorder %s19, 1
      %s186 = scalar_select %p185, %s19, 1
      %p187 = scmp.lt.s32.totalorder %s184, 1
      %s188 = scalar_select %p187, %s184, 1
      %s189 = smul.addr %s186, 2
      %s190 = sadd.s32 %s188, %s189
      %s191 = smul.addr %s190, 8
      %s192 = scalar_lea.vmem %s2, %s191
      %p193 = pneg %p127
      %p194 = pneg %p124
      %p195 = scmp.lt.s32.totalorder %s19, 1
      %s196 = scalar_select %p195, %s19, 1
      %p197 = scmp.lt.s32.totalorder %s20, 0
      %s198 = scalar_select %p197, %s20, 0
      %s199 = sadd.s32 %s198, %s196
      %s200 = smul.addr %s199, 2
      %s201 = scalar_lea.vmem %s3, %s200
      %s202 = smul.u32 2, %s20
      %p203 = scmp.lt.s32.totalorder %s19, 1
      %s204 = scalar_select %p203, %s19, 1
      %p205 = scmp.lt.s32.totalorder %s202, 1
      %s206 = scalar_select %p205, %s202, 1
      %s207 = smul.addr %s204, 10
      %s208 = sadd.s32 %s206, %s207
      %s209 = smul.addr %s208, 8
      %s210 = scalar_lea.vmem %s1, %s209
      %s211 = smul.u32 2, %s20
      %s212 = smul.u32 2, %s20
      %p213 = scmp.lt.s32.totalorder %s19, 1
      %s214 = scalar_select %p213, %s19, 1
      %p215 = scmp.lt.s32.totalorder %s212, 1
      %s216 = scalar_select %p215, %s212, 1
      %s217 = smul.addr %s214, 2
      %s218 = sadd.s32 %s216, %s217
      %s219 = smul.addr %s218, 8
      %s220 = scalar_lea.vmem %s2, %s219
      %s221 = smul.u32 2, %s20
      %p222 = scmp.lt.s32.totalorder %s19, 1
      %s223 = scalar_select %p222, %s19, 1
      %p224 = scmp.lt.s32.totalorder %s20, 0
      %s225 = scalar_select %p224, %s20, 0
      %s226 = sadd.s32 %s225, %s223
      %s227 = smul.addr %s226, 2
      %s228 = scalar_lea.vmem %s3, %s227
      %v229 = vld [vmem:[%s0] sm:$0xff]
      %v230 = vld [vmem:[%s210] sm:$0xff]
      %v231 = vld [vmem:[%s210 + $0x8] sm:$0xff]
      %v232 = vld [vmem:[%s210 + $0x10] sm:$0xff]
      %v233 = vld [vmem:[%s210 + $0x18] sm:$0xff]
      %v234 = vld [vmem:[%s210 + $0x20] sm:$0xff]
      %v235 = vld [vmem:[%s210 + $0x28] sm:$0xff]
      %v236 = vld [vmem:[%s210 + $0x30] sm:$0xff]
      %v237 = vld [vmem:[%s210 + $0x38] sm:$0xff]
      %v238 = vld [vmem:[%s210 + $0x40] sm:$0xff]
      %v239 = vld [vmem:[%s210 + $0x48] sm:$0xff]
      %vm240 = vcmask 326656
      %v242 = vsel %vm240, %v229, 0
      %244 = vmatpush.msra.mxu0 0.0
      %245 = vmatpush.msra.mxu0 0.0
      %246 = vmatpush.msra.mxu0 0.0
      %247 = vmatpush.msra.mxu0 0.0
      %248 = vmatpush.msra.mxu0 0.0
      %249 = vmatpush.msra.mxu0 0.0
      %250 = vmatpush.msra.mxu0 0.0
      %251 = vmatpush.msra.mxu0 0.0
      %252 = vmatpush.msra.mxu0 0.0
      %253 = vmatpush.msra.mxu0 0.0
      %254 = vmatpush.msra.mxu0 0.0
      %255 = vmatpush.msra.mxu0 %v238
      %256 = vmatpush.msra.mxu0 %v236
      %257 = vmatpush.msra.mxu0 %v234
      %258 = vmatpush.msra.mxu0 %v232
      %259 = vmatpush.msra.mxu0 %v230
      %260 = vmatmul.f32.gmra.mxu0 %v242
      %v261 = vpop.f32.mrf.mxu0
      %v262 = vadd.f32 0.0, %v261
      %263 = vdwg.mxu0
      %264 = vmatpush.msra.mxu0 0.0
      %265 = vmatpush.msra.mxu0 0.0
      %266 = vmatpush.msra.mxu0 0.0
      %267 = vmatpush.msra.mxu0 0.0
      %268 = vmatpush.msra.mxu0 0.0
      %269 = vmatpush.msra.mxu0 0.0
      %270 = vmatpush.msra.mxu0 0.0
      %271 = vmatpush.msra.mxu0 0.0
      %272 = vmatpush.msra.mxu0 0.0
      %273 = vmatpush.msra.mxu0 0.0
      %274 = vmatpush.msra.mxu0 0.0
      %275 = vmatpush.msra.mxu0 %v239
      %276 = vmatpush.msra.mxu0 %v237
      %277 = vmatpush.msra.mxu0 %v235
      %278 = vmatpush.msra.mxu0 %v233
      %279 = vmatpush.msra.mxu0 %v231
      %280 = vmatmul.f32.gmra.mxu0 %v242
      %v281 = vpop.f32.mrf.mxu0
      %v282 = vadd.f32 0.0, %v281
      %283 = vdwg.mxu0
      %284 = vst [vmem:[%s220] sm:$0xff] %v262
      %285 = vst [vmem:[%s220 + $0x8] sm:$0xff] %v282
      %v286 = vadd.f32 %v262, %v282
      %287 = vadd.xlane.f32.xlu0 %v286
      %v288 = vpop.xlane.xlu0 %287
      %v289 = vmul.f32 %v262, %v262
      %v290 = vmul.f32 %v282, %v282
      %v291 = vadd.f32 %v289, %v290
      %292 = vadd.xlane.f32.xlu0 %v291
      %v293 = vpop.xlane.xlu0 %292
      %v295 = vlaneseq
      %v296 = vand.u32 %v295, 127
      %v297 = vperm.slane %v288, %v296
      %v300 = vperm.slane %v293, %v296
      %vm302 = vcmask 1040384
      %v303 = vsel %vm302, %v297, %v300
      %vm304 = vcmask 58368
      %305 = vst.msk [vmem:[%s228] sm:$0x3] %vm304, %v303
      %s306 = smul.u32 2, %s20
      %p307 = scmp.lt.s32.totalorder %s19, 1
      %s308 = scalar_select %p307, %s19, 1
      %p309 = scmp.lt.s32.totalorder %s306, 1
      %s310 = scalar_select %p309, %s306, 1
      %s311 = smul.addr %s308, 2
      %s312 = sadd.s32 %s310, %s311
      %s313 = smul.addr %s312, 8
      %s314 = scalar_lea.vmem %s2, %s313
      %p315 = scmp.lt.s32.totalorder %s19, 1
      %s316 = scalar_select %p315, %s19, 1
      %p317 = scmp.lt.s32.totalorder %s20, 0
      %s318 = scalar_select %p317, %s20, 0
      %s319 = sadd.s32 %s318, %s316
      %s320 = smul.addr %s319, 2
      %s321 = scalar_lea.vmem %s3, %s320
      // Predicated region
      $region29: #{relu_conv_bn.2} parent=27 // pred_check
        %p322 = pneg %p96
      $region30: #{relu_conv_bn.2} parent=27 // pred_check_branch
        %324 = sbr.rel (%p322) target = $region32
      $region31: #{relu_conv_bn.2} parent=27 // pred_region
        %s325 = smul.u32 2, %s20
      $region32: #{relu_conv_bn.2} parent=27 // pred_fallthru
        _
      // Predicated region
      $region33: #{relu_conv_bn.2} parent=27 // pred_check
        %p326 = pneg %p124
      $region34: #{relu_conv_bn.2} parent=27 // pred_check_branch
        %328 = sbr.rel (%p326) target = $region36
      $region35: #{relu_conv_bn.2} parent=27 // pred_region
        _
      $region36: #{relu_conv_bn.2} parent=27 // pred_fallthru
        _
    $region28: #{relu_conv_bn.2} parent=5 // pred_fallthru
      _
    %p329 = scmp.le.s32.totalorder 2, %s10
    // Predicated region
    $region37: #{relu_conv_bn.2} parent=5 // pred_check
      %p330 = pneg %p329
    $region38: #{relu_conv_bn.2} parent=5 // pred_check_branch
      %332 = sbr.rel (%p330) target = $region40
    $region39: #{relu_conv_bn.2} parent=5 // pred_region
      %s333 = ssub.s32 %s10, 2
      // Predicated region
      $region41: #{relu_conv_bn.2} parent=39 // pred_check
        %p334 = pneg %p102
      $region42: #{relu_conv_bn.2} parent=39 // pred_check_branch
        %336 = sbr.rel (%p334) target = $region44
      $region43: #{relu_conv_bn.2} parent=39 // pred_region
        %s337 = smul.u32 2, %s22
        %p338 = scmp.lt.s32.totalorder %s21, 1
        %s339 = scalar_select %p338, %s21, 1
        %p340 = scmp.lt.s32.totalorder %s337, 1
        %s341 = scalar_select %p340, %s337, 1
        %s342 = smul.addr %s339, 2
        %s343 = sadd.s32 %s341, %s342
        %s344 = smul.addr %s343, 8
        %s345 = scalar_lea.vmem %s2, %s344
      $region44: #{relu_conv_bn.2} parent=39 // pred_fallthru
        _
      // Predicated region
      $region45: #{relu_conv_bn.2} parent=39 // pred_check
        %p346 = pneg %p130
      $region46: #{relu_conv_bn.2} parent=39 // pred_check_branch
        %348 = sbr.rel (%p346) target = $region48
      $region47: #{relu_conv_bn.2} parent=39 // pred_region
        %p349 = scmp.lt.s32.totalorder %s21, 1
        %s350 = scalar_select %p349, %s21, 1
        %p351 = scmp.lt.s32.totalorder %s22, 0
        %s352 = scalar_select %p351, %s22, 0
        %s353 = sadd.s32 %s352, %s350
        %s354 = smul.addr %s353, 2
        %s355 = scalar_lea.vmem %s3, %s354
      $region48: #{relu_conv_bn.2} parent=39 // pred_fallthru
        _
    $region40: #{relu_conv_bn.2} parent=5 // pred_fallthru
      _
  $region6: #{relu_conv_bn.2} parent=0 // loop_footer
    %s14 = sadd.s32 1, %s10
  $region7: #{relu_conv_bn.2} parent=0 // loop_footer_branch
    %9 = sbr.rel target = $region3
  $region8: #{relu_conv_bn.2} parent=0 // loop_exit
    _

// kernel: relu_conv_bn.3
$region0: #{relu_conv_bn.3}
  #allocation0 [shape = 'u32[]', space=smem, size = 0x4, offset = 0x4, fixed_abs, tag = 'smem constant byte address 0x4 - core index']
  #allocation1 [shape = 'u32[72,128]{1,0:T(1,128)}', space=vmem, size = 0x9000, scoped, tag = 'internal scratch']
  %s0 = inlined_call_operand.vmem [shape: f32[2,8,256], index: 0, kind: input, shape index: {}, may-alias: {0,3}]
  %s1 = inlined_call_operand.vmem [shape: f32[8,1], index: 1, kind: input, shape index: {}]
  %s2 = inlined_call_operand.vmem [shape: f32[8,1], index: 2, kind: input, shape index: {}]
  %s3 = inlined_call_operand.vmem [shape: f32[2,8,256], index: 3, kind: output, shape index: {}, may-alias: {0,3}]
  %s4 = sld [smem:[#allocation0]]
  $region45: #{relu_conv_bn.3} parent=0
    _
  %s6 = ssub.s32 1, %s4
  %s7 = scalar_select 0, %s6, %s4
  loop: start=0, step=1, limit=4
  $region2: #{relu_conv_bn.3} parent=0 // loop_pre_header
    _
  $region3: #{relu_conv_bn.3} parent=0 // loop_header
    %s9 = sphi 0, %s13
    %p10 = scmp.ge.s32.totalorder %s9, 4
    %s16 = sphi 0, %s28
    %s17 = sphi 0, %s24
    %s18 = sphi 0, %s16
    %s19 = sphi 0, %s17
    %s20 = sphi 0, %s18
    %s21 = sphi 0, %s19
    %s33 = sphi 0, %s35
    %s36 = sphi 0, %s33
    %s37 = sphi 0, %s36
    %s53 = sphi 0, %s37
    %s57 = sphi 0, %s57
    %s59 = sphi 0, %s57
    %s60 = sphi 0, %s59
    %s74 = sphi 0, %s60
    %s78 = sphi 0, %s78
    %s80 = sphi 0, %s78
    %s81 = sphi 0, %s80
    %s95 = sphi 0, %s81
    %s103 = sphi 0, %s105
    %s106 = sphi 0, %s103
    %s107 = sphi 0, %s106
    %s123 = sphi 0, %s107
  $region4: #{relu_conv_bn.3} parent=0 // loop_header_branch
    %12 = sbr.rel (%p10) target = $region8
  $region5: #{relu_conv_bn.3} parent=0 // loop_body
    %s14 = ssub.s32 %s9, 1
    %s15 = ssub.s32 %s9, 2
    %s22 = sadd.s32 1, %s17
    %p23 = scmp.ge.s32.totalorder %s22, 1
    %s24 = scalar_select %p23, 0, %s22
    %s25 = sadd.s32 1, %s16
    %s26 = scalar_select %p23, %s25, %s16
    %p27 = scmp.ge.s32.totalorder %s26, 2
    %s28 = scalar_select %p27, 0, %s26
    %s29 = ssub.s32 %s16, %s28
    %s30 = ssub.s32 %s17, %s24
    %s31 = sor.u32 %s29, %s30
    %p32 = scmp.eq.s32.totalorder %s31, 0
    %s34 = sadd.s32 %s33, 1
    %s35 = scalar_select %p32, %s33, %s34
    %p38 = pneg %p32
    %p39 = scmp.eq.s32.totalorder %s9, 1
    %p40 = por %p38, %p39
    %p41 = scmp.ne.s32.totalorder %s33, %s36
    %p42 = scmp.eq.s32.totalorder %s9, 0
    %p43 = por %p41, %p42
    %p44 = scmp.ne.s32.totalorder %s33, %s36
    %p45 = scmp.eq.s32.totalorder %s14, 1
    %p46 = por %p44, %p45
    %p47 = scmp.ne.s32.totalorder %s36, %s37
    %p48 = scmp.eq.s32.totalorder %s14, 0
    %p49 = por %p47, %p48
    %p50 = scmp.ne.s32.totalorder %s36, %s37
    %p51 = scmp.eq.s32.totalorder %s15, 1
    %p52 = por %p50, %p51
    %p54 = scmp.ne.s32.totalorder %s37, %s53
    %p55 = scmp.eq.s32.totalorder %s15, 0
    %p56 = por %p54, %p55
    %s58 = sadd.s32 %s57, 1
    %p61 = scmp.eq.s32.totalorder %s9, 1
    %p62 = scmp.ne.s32.totalorder %s57, %s59
    %p63 = scmp.eq.s32.totalorder %s9, 0
    %p64 = por %p62, %p63
    %p65 = scmp.ne.s32.totalorder %s57, %s59
    %p66 = scmp.eq.s32.totalorder %s14, 1
    %p67 = por %p65, %p66
    %p68 = scmp.ne.s32.totalorder %s59, %s60
    %p69 = scmp.eq.s32.totalorder %s14, 0
    %p70 = por %p68, %p69
    %p71 = scmp.ne.s32.totalorder %s59, %s60
    %p72 = scmp.eq.s32.totalorder %s15, 1
    %p73 = por %p71, %p72
    %p75 = scmp.ne.s32.totalorder %s60, %s74
    %p76 = scmp.eq.s32.totalorder %s15, 0
    %p77 = por %p75, %p76
    %s79 = sadd.s32 %s78, 1
    %p82 = scmp.eq.s32.totalorder %s9, 1
    %p83 = scmp.ne.s32.totalorder %s78, %s80
    %p84 = scmp.eq.s32.totalorder %s9, 0
    %p85 = por %p83, %p84
    %p86 = scmp.ne.s32.totalorder %s78, %s80
    %p87 = scmp.eq.s32.totalorder %s14, 1
    %p88 = por %p86, %p87
    %p89 = scmp.ne.s32.totalorder %s80, %s81
    %p90 = scmp.eq.s32.totalorder %s14, 0
    %p91 = por %p89, %p90
    %p92 = scmp.ne.s32.totalorder %s80, %s81
    %p93 = scmp.eq.s32.totalorder %s15, 1
    %p94 = por %p92, %p93
    %p96 = scmp.ne.s32.totalorder %s81, %s95
    %p97 = scmp.eq.s32.totalorder %s15, 0
    %p98 = por %p96, %p97
    %s99 = ssub.s32 %s16, %s28
    %s100 = ssub.s32 %s17, %s24
    %s101 = sor.u32 %s99, %s100
    %p102 = scmp.eq.s32.totalorder %s101, 0
    %s104 = sadd.s32 %s103, 1
    %s105 = scalar_select %p102, %s103, %s104
    %p108 = pneg %p102
    %p109 = scmp.eq.s32.totalorder %s9, 1
    %p110 = por %p108, %p109
    %p111 = scmp.ne.s32.totalorder %s103, %s106
    %p112 = scmp.eq.s32.totalorder %s9, 0
    %p113 = por %p111, %p112
    %p114 = scmp.ne.s32.totalorder %s103, %s106
    %p115 = scmp.eq.s32.totalorder %s14, 1
    %p116 = por %p114, %p115
    %p117 = scmp.ne.s32.totalorder %s106, %s107
    %p118 = scmp.eq.s32.totalorder %s14, 0
    %p119 = por %p117, %p118
    %p120 = scmp.ne.s32.totalorder %s106, %s107
    %p121 = scmp.eq.s32.totalorder %s15, 1
    %p122 = por %p120, %p121
    %p124 = scmp.ne.s32.totalorder %s107, %s123
    %p125 = scmp.eq.s32.totalorder %s15, 0
    %p126 = por %p124, %p125
    %p127 = scmp.le.s32.totalorder 1, %s9
    %p128 = scmp.lt.s32.totalorder %s9, 3
    %p129 = pnand %p127, %p128
    %p130 = pneg %p129
    // Predicated region
    $region9: #{relu_conv_bn.3} parent=5 // pred_check
      _
    $region10: #{relu_conv_bn.3} parent=5 // pred_check_branch
      %132 = sbr.rel (%p129) target = $region12
    $region11: #{relu_conv_bn.3} parent=5 // pred_region
      %s133 = ssub.s32 %s9, 1
      // Predicated region
      $region13: #{relu_conv_bn.3} parent=11 // pred_check
        %p134 = pneg %p70
      $region14: #{relu_conv_bn.3} parent=11 // pred_check_branch
        %136 = sbr.rel (%p134) target = $region16
      $region15: #{relu_conv_bn.3} parent=11 // pred_region
        _
      $region16: #{relu_conv_bn.3} parent=11 // pred_fallthru
        _
      // Predicated region
      $region17: #{relu_conv_bn.3} parent=11 // pred_check
        %p137 = pneg %p91
      $region18: #{relu_conv_bn.3} parent=11 // pred_check_branch
        %139 = sbr.rel (%p137) target = $region20
      $region19: #{relu_conv_bn.3} parent=11 // pred_region
        _
      $region20: #{relu_conv_bn.3} parent=11 // pred_fallthru
        _
    $region12: #{relu_conv_bn.3} parent=5 // pred_fallthru
      _
    %p140 = scmp.lt.s32.totalorder %s9, 2
    // Predicated region
    $region21: #{relu_conv_bn.3} parent=5 // pred_check
      %p141 = pneg %p140
    $region22: #{relu_conv_bn.3} parent=5 // pred_check_branch
      %143 = sbr.rel (%p141) target = $region24
    $region23: #{relu_conv_bn.3} parent=5 // pred_region
      // Predicated region
      $region25: #{relu_conv_bn.3} parent=23 // pred_check
        %p144 = pneg %p43
      $region26: #{relu_conv_bn.3} parent=23 // pred_check_branch
        %146 = sbr.rel (%p144) target = $region28
      $region27: #{relu_conv_bn.3} parent=23 // pred_region
        %s147 = smul.u32 2, %s17
        %p148 = scmp.lt.s32.totalorder %s16, 1
        %s149 = scalar_select %p148, %s16, 1
        %p150 = scmp.lt.s32.totalorder %s147, 1
        %s151 = scalar_select %p150, %s147, 1
        %s152 = smul.addr %s149, 2
        %s153 = sadd.s32 %s151, %s152
        %s154 = smul.addr %s153, 8
        %s155 = scalar_lea.vmem %s0, %s154
        %s156 = smul.u32 2, %s17
      $region28: #{relu_conv_bn.3} parent=23 // pred_fallthru
        _
    $region24: #{relu_conv_bn.3} parent=5 // pred_fallthru
      _
    %p157 = scmp.le.s32.totalorder 1, %s9
    %p158 = scmp.lt.s32.totalorder %s9, 3
    %p159 = pnand %p157, %p158
    %p160 = pneg %p159
    // Predicated region
    $region29: #{relu_conv_bn.3} parent=5 // pred_check
      _
    $region30: #{relu_conv_bn.3} parent=5 // pred_check_branch
      %162 = sbr.rel (%p159) target = $region32
    $region31: #{relu_conv_bn.3} parent=5 // pred_region
      %s163 = ssub.s32 %s9, 1
      %s164 = smul.u32 2, %s19
      %p165 = scmp.lt.s32.totalorder %s18, 1
      %s166 = scalar_select %p165, %s18, 1
      %p167 = scmp.lt.s32.totalorder %s164, 1
      %s168 = scalar_select %p167, %s164, 1
      %s169 = smul.addr %s166, 2
      %s170 = sadd.s32 %s168, %s169
      %s171 = smul.addr %s170, 8
      %s172 = scalar_lea.vmem %s0, %s171
      %p173 = pneg %p49
      %p174 = pneg %p46
      %p175 = pneg %p70
      %p176 = pneg %p67
      %p177 = pneg %p91
      %p178 = pneg %p88
      %p179 = pneg %p119
      %p180 = pneg %p116
      %s181 = smul.u32 2, %s19
      %p182 = scmp.lt.s32.totalorder %s18, 1
      %s183 = scalar_select %p182, %s18, 1
      %p184 = scmp.lt.s32.totalorder %s181, 1
      %s185 = scalar_select %p184, %s181, 1
      %s186 = smul.addr %s183, 2
      %s187 = sadd.s32 %s185, %s186
      %s188 = smul.addr %s187, 8
      %s189 = scalar_lea.vmem %s3, %s188
      %s190 = smul.u32 2, %s19
      %p191 = scmp.lt.s32.totalorder %s18, 1
      %s192 = scalar_select %p191, %s18, 1
      %p193 = scmp.lt.s32.totalorder %s190, 1
      %s194 = scalar_select %p193, %s190, 1
      %s195 = smul.addr %s192, 2
      %s196 = sadd.s32 %s194, %s195
      %s197 = smul.addr %s196, 8
      %s198 = scalar_lea.vmem %s0, %s197
      %s199 = smul.u32 2, %s19
      %s200 = smul.u32 2, %s19
      %p201 = scmp.lt.s32.totalorder %s18, 1
      %s202 = scalar_select %p201, %s18, 1
      %p203 = scmp.lt.s32.totalorder %s200, 1
      %s204 = scalar_select %p203, %s200, 1
      %s205 = smul.addr %s202, 2
      %s206 = sadd.s32 %s204, %s205
      %s207 = smul.addr %s206, 8
      %s208 = scalar_lea.vmem %s3, %s207
      %s209 = smul.u32 2, %s19
      %v210 = vld [vmem:[%s198] sm:$0xff]
      %v211 = vld [vmem:[%s198 + $0x8] sm:$0xff]
      %v212 = vld [vmem:[%s1] sm:$0xff]
      %214 = vset.pattern.permute.xlu0 0
      %215 = vperm.xlu0 %214, %v212
      %v216 = vpop.permute.xlu0 %215
      %v218 = vmul.f32 %v210, %v216
      %v219 = vmul.f32 %v211, %v216
      %v220 = vld [vmem:[%s2] sm:$0xff]
      %222 = vset.pattern.permute.xlu0 0
      %223 = vperm.xlu0 %222, %v220
      %v224 = vpop.permute.xlu0 %223
      %v226 = vadd.f32 %v218, %v224
      %v227 = vadd.f32 %v219, %v224
      %228 = vst [vmem:[%s208] sm:$0xff] %v226
      %229 = vst [vmem:[%s208 + $0x8] sm:$0xff] %v227
      %s230 = smul.u32 2, %s19
      %p231 = scmp.lt.s32.totalorder %s18, 1
      %s232 = scalar_select %p231, %s18, 1
      %p233 = scmp.lt.s32.totalorder %s230, 1
      %s234 = scalar_select %p233, %s230, 1
      %s235 = smul.addr %s232, 2
      %s236 = sadd.s32 %s234, %s235
      %s237 = smul.addr %s236, 8
      %s238 = scalar_lea.vmem %s3, %s237
      // Predicated region
      $region33: #{relu_conv_bn.3} parent=31 // pred_check
        %p239 = pneg %p116
      $region34: #{relu_conv_bn.3} parent=31 // pred_check_branch
        %241 = sbr.rel (%p239) target = $region36
      $region35: #{relu_conv_bn.3} parent=31 // pred_region
        %s242 = smul.u32 2, %s19
      $region36: #{relu_conv_bn.3} parent=31 // pred_fallthru
        _
    $region32: #{relu_conv_bn.3} parent=5 // pred_fallthru
      _
    %p243 = scmp.le.s32.totalorder 2, %s9
    // Predicated region
    $region37: #{relu_conv_bn.3} parent=5 // pred_check
      %p244 = pneg %p243
    $region38: #{relu_conv_bn.3} parent=5 // pred_check_branch
      %246 = sbr.rel (%p244) target = $region40
    $region39: #{relu_conv_bn.3} parent=5 // pred_region
      %s247 = ssub.s32 %s9, 2
      // Predicated region
      $region41: #{relu_conv_bn.3} parent=39 // pred_check
        %p248 = pneg %p122
      $region42: #{relu_conv_bn.3} parent=39 // pred_check_branch
        %250 = sbr.rel (%p248) target = $region44
      $region43: #{relu_conv_bn.3} parent=39 // pred_region
        %s251 = smul.u32 2, %s21
        %p252 = scmp.lt.s32.totalorder %s20, 1
        %s253 = scalar_select %p252, %s20, 1
        %p254 = scmp.lt.s32.totalorder %s251, 1
        %s255 = scalar_select %p254, %s251, 1
        %s256 = smul.addr %s253, 2
        %s257 = sadd.s32 %s255, %s256
        %s258 = smul.addr %s257, 8
        %s259 = scalar_lea.vmem %s3, %s258
      $region44: #{relu_conv_bn.3} parent=39 // pred_fallthru
        _
    $region40: #{relu_conv_bn.3} parent=5 // pred_fallthru
      _
  $region6: #{relu_conv_bn.3} parent=0 // loop_footer
    %s13 = sadd.s32 1, %s9
  $region7: #{relu_conv_bn.3} parent=0 // loop_footer_branch
    %8 = sbr.rel target = $region3
  $region8: #{relu_conv_bn.3} parent=0 // loop_exit
    _

</llo_original>
